<compile_context>
chip_gen: v6e
topology: v6e:2x2x1
jax: 0.10.0
libtpu: 0.0.40
codegen_flags: <defaults>
</compile_context>

<pallas_src>
import functools
import math

import jax
import jax.numpy as jnp
from jax import lax
from jax.experimental import pallas as pl
from jax.experimental.pallas import tpu as pltpu

_COS_EPS = 1e-8  # matches torch.cosine_similarity default eps


def _round_up(a: int, b: int) -> int:
    return (a + b - 1) // b * b


def _normalize_kernel(t_ref, o_ref, *, inv_sqrt_t: float):
    """Row-L2-normalize and fold 1/sqrt(T) into the scale. t_ref: (TILE, Dp)."""
    x = t_ref[...].astype(jnp.float32)
    norm = jnp.maximum(jnp.sqrt(jnp.sum(x * x, axis=-1, keepdims=True)), _COS_EPS)
    o_ref[...] = (x * (inv_sqrt_t / norm)).astype(o_ref.dtype)


def _gram_loss_kernel(a_ref, b_ref, p_ref, o_ref, row_tot_ref, *,
                      shift: float, pad_term: float):
    """Blocked Gram / loss kernel.

    a_ref: (ROW_TILE, Dp) row tile (normalized, scaled by 1/sqrt(T))   block (ri, 0)
    b_ref: (COL_TILE, Dp) streamed column tile (same matrix)           block (ci, 0)
    p_ref: (ROW_TILE, Dp) partner rows ([y;x])                         block depends on spec
    o_ref: (ROW_TILE, 1)  per-row log(pos/neg)
    row_tot_ref: (ROW_TILE, 1) f32 scratch accumulating sum_j exp(sim_ij - shift)
    """
    # NOTE: program_id/num_programs only at the top level (not inside pl.when bodies).
    ci = pl.program_id(1)
    last = pl.num_programs(1) - 1

    @pl.when(ci == 0)
    def _init():
        row_tot_ref[...] = jnp.zeros_like(row_tot_ref)

    a = a_ref[...]
    # Contract the last (lane) dim of both operands -> A @ B^T straight into the MXU.
    sim = lax.dot_general(a, b_ref[...],
                          dimension_numbers=(((1,), (1,)), ((), ())),
                          preferred_element_type=jnp.float32)          # (ROW_TILE, COL_TILE)
    row_tot_ref[...] += jnp.sum(jnp.exp(sim - shift), axis=1, keepdims=True)

    @pl.when(ci == last)
    def _epilogue():
        a32 = a.astype(jnp.float32)
        p32 = p_ref[...].astype(jnp.float32)
        # Diagonal (self) and positive terms: once per row block, no full-size masks.
        self_aff = jnp.exp(jnp.sum(a32 * a32, axis=-1, keepdims=True) - shift)
        pos_logit = jnp.sum(a32 * p32, axis=-1, keepdims=True) - shift
        pos = jnp.exp(pos_logit)
        # Each zero-padded column contributed exactly exp(0 - shift) to every row.
        total = row_tot_ref[...] - pad_term
        neg = total - self_aff - pos
        # log(pos/neg): the shift cancels; use pos_logit directly for the numerator.
        o_ref[...] = pos_logit - jnp.log(neg)


def _vmem_budget_bytes() -> int:
    """Generation-aware scoped-VMEM budget with headroom (fallback is v7x-safe)."""
    try:
        cap = int(getattr(pltpu.get_tpu_info(), "vmem_capacity_bytes", 64 << 20))
    except Exception:
        cap = 64 << 20
    return max(cap - (16 << 20), 32 << 20)


def contrastive_loss(x, y, T: float = 0.15, *, gram_dtype=None,
                     row_tile=None, col_tile=None):
    """JAX/Pallas equivalent of ContrastiveLoss(T).forward(x, y). Returns scalar f32."""
    assert x.shape == y.shape and x.ndim == 2
    n, d = x.shape
    m = 2 * n
    if gram_dtype is None:
        gram_dtype = jnp.bfloat16       # halves DMA bytes, native MXU rate; f32 accumulate
    isz = jnp.dtype(gram_dtype).itemsize
    d_pad = _round_up(d, 128)

    if col_tile is None:
        col_tile = 256 if m > 256 else 128
    if row_tile is None:
        row_tile = min(512, _round_up(max(m, col_tile), col_tile))
    row_tile = max(row_tile, col_tile)
    assert row_tile % col_tile == 0

    budget = _vmem_budget_bytes()

    def gram_vmem_need(rt):
        dbl_in = 2 * d_pad * isz * (2 * rt + col_tile)   # a, p, b double-buffered
        temps = 4 * rt * col_tile * 4                    # sim / exp f32 temporaries
        small = 3 * rt * 4                               # (rt,1) output + scratch
        return dbl_in + temps + small

    while gram_vmem_need(row_tile) > budget and row_tile > col_tile:
        row_tile //= 2

    m_pad = _round_up(m, row_tile)
    g_rows = m_pad // row_tile
    g_cols = m_pad // col_tile

    shift = 1.0 / float(T)                       # cos/T <= 1/T -> exp argument <= ~0
    pad_cols = m_pad - m
    pad_term = float(pad_cols) * math.exp(-shift)

    t = jnp.concatenate([x, y], axis=0)                              # (2N, D) glue
    t = jnp.pad(t, ((0, m_pad - m), (0, d_pad - d)))                 # zero padding

    # --- prologue: normalize rows once, fold 1/sqrt(T) into the scale ---------------
    p_tile = col_tile
    prologue_need = 2 * p_tile * d_pad * (4 + isz) + (2 << 20)
    tn = pl.pallas_call(
        functools.partial(_normalize_kernel, inv_sqrt_t=1.0 / math.sqrt(float(T))),
        out_shape=jax.ShapeDtypeStruct((m_pad, d_pad), gram_dtype),
        grid=(m_pad // p_tile,),
        in_specs=[pl.BlockSpec((p_tile, d_pad), lambda i: (i, 0))],
        out_specs=pl.BlockSpec((p_tile, d_pad), lambda i: (i, 0)),
        compiler_params=pltpu.CompilerParams(
            dimension_semantics=("parallel",),
            vmem_limit_bytes=int(min(max(prologue_need, 16 << 20), budget))),
    )(t)

    # Partner of row i is row (i+n) % 2n == rows [y_norm; x_norm].
    if n % row_tile == 0:
        # Aligned: alias tn through the index_map — no materialized partner array.
        nb, gb = n // row_tile, m // row_tile
        partner_arg = tn
        partner_spec = pl.BlockSpec((row_tile, d_pad),
                                    lambda ri, ci: ((ri + nb) % gb, 0))
    else:
        partner_arg = jnp.concatenate([tn[n:m], tn[:n], tn[m:]], axis=0)
        partner_spec = pl.BlockSpec((row_tile, d_pad), lambda ri, ci: (ri, 0))

    vmem_limit = int(min(max(gram_vmem_need(row_tile) + (8 << 20), 32 << 20), budget))

    per_row = pl.pallas_call(
        functools.partial(_gram_loss_kernel, shift=shift, pad_term=pad_term),
        out_shape=jax.ShapeDtypeStruct((m_pad, 1), jnp.float32),
        grid=(g_rows, g_cols),                 # rows outer/parallel, cols = reduction last
        in_specs=[pl.BlockSpec((row_tile, d_pad), lambda ri, ci: (ri, 0)),
                  pl.BlockSpec((col_tile, d_pad), lambda ri, ci: (ci, 0)),
                  partner_spec],
        out_specs=pl.BlockSpec((row_tile, 1), lambda ri, ci: (ri, 0)),
        scratch_shapes=[pltpu.VMEM((row_tile, 1), jnp.float32)],
        compiler_params=pltpu.CompilerParams(
            dimension_semantics=("parallel", "arbitrary"),
            vmem_limit_bytes=vmem_limit),
    )(tn, tn, partner_arg)

    # Padded rows are simply discarded here (no in-kernel row mask / program_id needed).
    return -jnp.sum(per_row[:m, 0])


def _reference_loss(x, y, T):
    """Pure-JAX reference mirroring the PyTorch module (full-precision Gram)."""
    t = jnp.concatenate([x, y], axis=0).astype(jnp.float32)
    norms = jnp.maximum(jnp.sqrt(jnp.sum(t * t, axis=-1, keepdims=True)), _COS_EPS)
    tn = t / norms
    sim = jnp.einsum("id,jd->ij", tn, tn, precision=lax.Precision.HIGHEST) / T
    aff = jnp.exp(sim)
    m = t.shape[0]
    n = x.shape[0]
    idx = jnp.arange(m)
    pos = aff[idx, (idx + n) % m]
    neg = jnp.sum(aff, axis=1) - aff[idx, idx] - pos
    return -jnp.sum(jnp.log(pos / neg))


if __name__ == "__main__":
    # Small deterministic example: batch n=4 samples per view, hidden D=32.
    key = jax.random.PRNGKey(0)
    kx, ky = jax.random.split(key)
    n, d = 4, 32
    x = jax.random.normal(kx, (n, d), dtype=jnp.float32)
    y = jax.random.normal(ky, (n, d), dtype=jnp.float32)

    loss_bf16 = contrastive_loss(x, y, T=0.15)                          # default bf16 path
    loss_f32 = contrastive_loss(x, y, T=0.15, gram_dtype=jnp.float32)   # high-precision path
    jax.block_until_ready((loss_bf16, loss_f32))

    ref = _reference_loss(x, y, 0.15)
    scale = max(1.0, abs(float(ref)))
    assert loss_bf16.shape == () and bool(jnp.isfinite(loss_bf16))
    assert loss_f32.shape == () and bool(jnp.isfinite(loss_f32))
    assert abs(float(loss_f32) - float(ref)) <= 1e-2 * scale, (float(loss_f32), float(ref))
    assert abs(float(loss_bf16) - float(ref)) <= 5e-2 * scale, (float(loss_bf16), float(ref))
    print("KERNEL_OK")
</pallas_src>

<mosaic_0001>
module attributes {stable_mosaic.version = 11 : i64} {
  func.func @_normalize_kernel(%arg0: i32, %arg1: memref<128x128xf32, #tpu.memory_space<vmem>>, %arg2: memref<128x128xbf16, #tpu.memory_space<vmem>>) attributes {dimension_semantics = [#tpu.dimension_semantics<parallel>], iteration_bounds = array<i64: 1>, scalar_prefetch = 0 : i64, scratch_operands = 0 : i64, tpu.core_type = #tpu.core_type<tc>, window_params = [{transform_indices = @transform_0, window_bounds = array<i64: 128, 128>}, {transform_indices = @transform_1, window_bounds = array<i64: 128, 128>}]} {
    %c0 = arith.constant 0 : index
    %c0_0 = arith.constant 0 : index
    %0 = vector.load %arg1[%c0, %c0_0] : memref<128x128xf32, #tpu.memory_space<vmem>>, vector<128x128xf32>
    %1 = arith.mulf %0, %0 : vector<128x128xf32>
    %cst = arith.constant dense<0.000000e+00> : vector<128xf32>
    %2 = vector.multi_reduction <add>, %1, %cst [1] : vector<128x128xf32> to vector<128xf32>
    %3 = vector.shape_cast %2 : vector<128xf32> to vector<128x1xf32>
    %4 = math.sqrt %3 : vector<128x1xf32>
    %cst_1 = arith.constant 9.99999993E-9 : f32
    %5 = vector.broadcast %cst_1 : f32 to vector<128x1xf32>
    %6 = arith.maximumf %4, %5 : vector<128x1xf32>
    %cst_2 = arith.constant 2.58198881 : f32
    %7 = vector.broadcast %cst_2 : f32 to vector<128x1xf32>
    %8 = arith.divf %7, %6 : vector<128x1xf32>
    %9 = vector.broadcast %8 : vector<128x1xf32> to vector<128x128xf32>
    %10 = arith.mulf %0, %9 : vector<128x128xf32>
    %11 = arith.truncf %10 : vector<128x128xf32> to vector<128x128xbf16>
    %c0_3 = arith.constant 0 : index
    %c0_4 = arith.constant 0 : index
    %12 = vector.load %arg2[%c0_3, %c0_4] : memref<128x128xbf16, #tpu.memory_space<vmem>>, vector<128x128xbf16>
    tpu.vector_store %arg2[%c0_3, %c0_4], %11 {strides = array<i32>} : memref<128x128xbf16, #tpu.memory_space<vmem>>, vector<128x128xbf16>,
    return
  }
  func.func @transform_0(%arg0: i32) -> (i32, i32) {
    %c0_i32 = arith.constant 0 : i32
    %c0_i32_0 = arith.constant 0 : i32
    return %arg0, %c0_i32 : i32, i32
  }
  func.func @transform_1(%arg0: i32) -> (i32, i32) {
    %c0_i32 = arith.constant 0 : i32
    %c0_i32_0 = arith.constant 0 : i32
    return %arg0, %c0_i32 : i32, i32
  }
}

</mosaic_0001>

<llo_original>
// kernel: tpu_custom_call.1
$region0: #{tpu_custom_call.1}
  #allocation0 [shape = 'u32[]', space=smem, size = 0x4, offset = 0x4, fixed_abs, tag = 'smem constant byte address 0x4 - core index']
  #allocation1 [shape = 'u32[144,128]{1,0:T(1,128)}', space=vmem, size = 0x12000, scoped, tag = 'internal scratch']
  %s0 = inlined_call_operand.hbm [shape: f32[128,128], index: 0, kind: input, shape index: {}]
  %s1 = inlined_call_operand.hbm [shape: bf16[128,128], index: 1, kind: output, shape index: {}]
  %s2 = sld [smem:[#allocation0]]
  $region18: #{tpu_custom_call.1} parent=0
    _
  %s4 = ssub.s32 1, %s2
  %s5 = scalar_select 0, %s4, %s2
  $region1: #{tpu_custom_call.1} parent=0
    #allocation2 [shape = 'u8[65536]{0}', space=vmem, size = 0x10000, scoped, tag = 'input window, operand 0, single buffered']
    #allocation3 [shape = 's32[1]{0}', space=sflag, size = 0x4, scoped, tag = 'scoped memory for tpu_custom_call.1']
    #allocation4 [shape = 's32[1]{0}', space=sflag, size = 0x4, scoped, tag = 'scoped memory for tpu_custom_call.1']
    #allocation5 [shape = 'u8[32768]{0}', space=vmem, size = 0x8000, scoped, tag = 'output window, operand 0, single buffered']
    %6 = vsyncpa [#allocation3], 0
    %7 = vsyncpa [#allocation4], 0
    // Predicated region
    $region2: #{tpu_custom_call.1} parent=1 // pred_check
      _
    $region3: #{tpu_custom_call.1} parent=1 // pred_check_branch
      %9 = sbr.rel (0) target = $region5
    $region4: #{tpu_custom_call.1} parent=1 // pred_region
      %s11 = ssub.s32 2048, 2048
      %12 = vsyncadd [#allocation3], %s11
      %s13 = sshll.u32 [#allocation2], 4
      %s14 = int_to_ptr.vmem [resolvable:$true] %s13
      %19 = dma.hbm_to_vmem [thread:$0]  %s0, 2048, %s14, [#allocation3], 128, 128, 8
    $region5: #{tpu_custom_call.1} parent=1 // pred_fallthru
      _
    // Predicated region
    $region6: #{tpu_custom_call.1} parent=1 // pred_check
      _
    $region7: #{tpu_custom_call.1} parent=1 // pred_check_branch
      %21 = sbr.rel (0) target = $region9
    $region8: #{tpu_custom_call.1} parent=1 // pred_region
      %22 = dma.done [#allocation3], 2048
    $region9: #{tpu_custom_call.1} parent=1 // pred_fallthru
      _
    %v23 = vld [vmem:[#allocation2] sm:$0xff]
    %v24 = vld [vmem:[#allocation2 + $0x8] sm:$0xff]
    %v25 = vld [vmem:[#allocation2 + $0x10] sm:$0xff]
    %v26 = vld [vmem:[#allocation2 + $0x18] sm:$0xff]
    %v27 = vld [vmem:[#allocation2 + $0x20] sm:$0xff]
    %v28 = vld [vmem:[#allocation2 + $0x28] sm:$0xff]
    %v29 = vld [vmem:[#allocation2 + $0x30] sm:$0xff]
    %v30 = vld [vmem:[#allocation2 + $0x38] sm:$0xff]
    %v31 = vld [vmem:[#allocation2 + $0x40] sm:$0xff]
    %v32 = vld [vmem:[#allocation2 + $0x48] sm:$0xff]
    %v33 = vld [vmem:[#allocation2 + $0x50] sm:$0xff]
    %v34 = vld [vmem:[#allocation2 + $0x58] sm:$0xff]
    %v35 = vld [vmem:[#allocation2 + $0x60] sm:$0xff]
    %v36 = vld [vmem:[#allocation2 + $0x68] sm:$0xff]
    %v37 = vld [vmem:[#allocation2 + $0x70] sm:$0xff]
    %v38 = vld [vmem:[#allocation2 + $0x78] sm:$0xff]
    %v39 = vmul.f32 %v23, %v23
    %v40 = vmul.f32 %v24, %v24
    %v41 = vmul.f32 %v25, %v25
    %v42 = vmul.f32 %v26, %v26
    %v43 = vmul.f32 %v27, %v27
    %v44 = vmul.f32 %v28, %v28
    %v45 = vmul.f32 %v29, %v29
    %v46 = vmul.f32 %v30, %v30
    %v47 = vmul.f32 %v31, %v31
    %v48 = vmul.f32 %v32, %v32
    %v49 = vmul.f32 %v33, %v33
    %v50 = vmul.f32 %v34, %v34
    %v51 = vmul.f32 %v35, %v35
    %v52 = vmul.f32 %v36, %v36
    %v53 = vmul.f32 %v37, %v37
    %v54 = vmul.f32 %v38, %v38
    %55 = vadd.xlane.f32.xlu0 %v39
    %v56 = vpop.xlane.xlu0 %55
    %57 = vadd.xlane.f32.xlu0 %v40
    %v58 = vpop.xlane.xlu0 %57
    %59 = vadd.xlane.f32.xlu0 %v41
    %v60 = vpop.xlane.xlu0 %59
    %61 = vadd.xlane.f32.xlu0 %v42
    %v62 = vpop.xlane.xlu0 %61
    %63 = vadd.xlane.f32.xlu0 %v43
    %v64 = vpop.xlane.xlu0 %63
    %65 = vadd.xlane.f32.xlu0 %v44
    %v66 = vpop.xlane.xlu0 %65
    %67 = vadd.xlane.f32.xlu0 %v45
    %v68 = vpop.xlane.xlu0 %67
    %69 = vadd.xlane.f32.xlu0 %v46
    %v70 = vpop.xlane.xlu0 %69
    %71 = vadd.xlane.f32.xlu0 %v47
    %v72 = vpop.xlane.xlu0 %71
    %73 = vadd.xlane.f32.xlu0 %v48
    %v74 = vpop.xlane.xlu0 %73
    %75 = vadd.xlane.f32.xlu0 %v49
    %v76 = vpop.xlane.xlu0 %75
    %77 = vadd.xlane.f32.xlu0 %v50
    %v78 = vpop.xlane.xlu0 %77
    %79 = vadd.xlane.f32.xlu0 %v51
    %v80 = vpop.xlane.xlu0 %79
    %81 = vadd.xlane.f32.xlu0 %v52
    %v82 = vpop.xlane.xlu0 %81
    %83 = vadd.xlane.f32.xlu0 %v53
    %v84 = vpop.xlane.xlu0 %83
    %85 = vadd.xlane.f32.xlu0 %v54
    %v86 = vpop.xlane.xlu0 %85
    %v87 = vrsqrt.pop %v56
    %v88 = vmul.f32 %v56, %v87
    %vm89 = vcmp.eq.f32.partialorder %v56, inf
    %v90 = vsel %vm89, %v56, %v88
    %vm91 = vcmp.eq.f32.partialorder %v56, 0.0
    %v92 = vand.u32 %v56, 2147483648
    %v93 = vsel %vm91, %v92, %v90
    %v94 = vrsqrt.pop %v58
    %v95 = vmul.f32 %v58, %v94
    %vm96 = vcmp.eq.f32.partialorder %v58, inf
    %v97 = vsel %vm96, %v58, %v95
    %vm98 = vcmp.eq.f32.partialorder %v58, 0.0
    %v99 = vand.u32 %v58, 2147483648
    %v100 = vsel %vm98, %v99, %v97
    %v101 = vrsqrt.pop %v60
    %v102 = vmul.f32 %v60, %v101
    %vm103 = vcmp.eq.f32.partialorder %v60, inf
    %v104 = vsel %vm103, %v60, %v102
    %vm105 = vcmp.eq.f32.partialorder %v60, 0.0
    %v106 = vand.u32 %v60, 2147483648
    %v107 = vsel %vm105, %v106, %v104
    %v108 = vrsqrt.pop %v62
    %v109 = vmul.f32 %v62, %v108
    %vm110 = vcmp.eq.f32.partialorder %v62, inf
    %v111 = vsel %vm110, %v62, %v109
    %vm112 = vcmp.eq.f32.partialorder %v62, 0.0
    %v113 = vand.u32 %v62, 2147483648
    %v114 = vsel %vm112, %v113, %v111
    %v115 = vrsqrt.pop %v64
    %v116 = vmul.f32 %v64, %v115
    %vm117 = vcmp.eq.f32.partialorder %v64, inf
    %v118 = vsel %vm117, %v64, %v116
    %vm119 = vcmp.eq.f32.partialorder %v64, 0.0
    %v120 = vand.u32 %v64, 2147483648
    %v121 = vsel %vm119, %v120, %v118
    %v122 = vrsqrt.pop %v66
    %v123 = vmul.f32 %v66, %v122
    %vm124 = vcmp.eq.f32.partialorder %v66, inf
    %v125 = vsel %vm124, %v66, %v123
    %vm126 = vcmp.eq.f32.partialorder %v66, 0.0
    %v127 = vand.u32 %v66, 2147483648
    %v128 = vsel %vm126, %v127, %v125
    %v129 = vrsqrt.pop %v68
    %v130 = vmul.f32 %v68, %v129
    %vm131 = vcmp.eq.f32.partialorder %v68, inf
    %v132 = vsel %vm131, %v68, %v130
    %vm133 = vcmp.eq.f32.partialorder %v68, 0.0
    %v134 = vand.u32 %v68, 2147483648
    %v135 = vsel %vm133, %v134, %v132
    %v136 = vrsqrt.pop %v70
    %v137 = vmul.f32 %v70, %v136
    %vm138 = vcmp.eq.f32.partialorder %v70, inf
    %v139 = vsel %vm138, %v70, %v137
    %vm140 = vcmp.eq.f32.partialorder %v70, 0.0
    %v141 = vand.u32 %v70, 2147483648
    %v142 = vsel %vm140, %v141, %v139
    %v143 = vrsqrt.pop %v72
    %v144 = vmul.f32 %v72, %v143
    %vm145 = vcmp.eq.f32.partialorder %v72, inf
    %v146 = vsel %vm145, %v72, %v144
    %vm147 = vcmp.eq.f32.partialorder %v72, 0.0
    %v148 = vand.u32 %v72, 2147483648
    %v149 = vsel %vm147, %v148, %v146
    %v150 = vrsqrt.pop %v74
    %v151 = vmul.f32 %v74, %v150
    %vm152 = vcmp.eq.f32.partialorder %v74, inf
    %v153 = vsel %vm152, %v74, %v151
    %vm154 = vcmp.eq.f32.partialorder %v74, 0.0
    %v155 = vand.u32 %v74, 2147483648
    %v156 = vsel %vm154, %v155, %v153
    %v157 = vrsqrt.pop %v76
    %v158 = vmul.f32 %v76, %v157
    %vm159 = vcmp.eq.f32.partialorder %v76, inf
    %v160 = vsel %vm159, %v76, %v158
    %vm161 = vcmp.eq.f32.partialorder %v76, 0.0
    %v162 = vand.u32 %v76, 2147483648
    %v163 = vsel %vm161, %v162, %v160
    %v164 = vrsqrt.pop %v78
    %v165 = vmul.f32 %v78, %v164
    %vm166 = vcmp.eq.f32.partialorder %v78, inf
    %v167 = vsel %vm166, %v78, %v165
    %vm168 = vcmp.eq.f32.partialorder %v78, 0.0
    %v169 = vand.u32 %v78, 2147483648
    %v170 = vsel %vm168, %v169, %v167
    %v171 = vrsqrt.pop %v80
    %v172 = vmul.f32 %v80, %v171
    %vm173 = vcmp.eq.f32.partialorder %v80, inf
    %v174 = vsel %vm173, %v80, %v172
    %vm175 = vcmp.eq.f32.partialorder %v80, 0.0
    %v176 = vand.u32 %v80, 2147483648
    %v177 = vsel %vm175, %v176, %v174
    %v178 = vrsqrt.pop %v82
    %v179 = vmul.f32 %v82, %v178
    %vm180 = vcmp.eq.f32.partialorder %v82, inf
    %v181 = vsel %vm180, %v82, %v179
    %vm182 = vcmp.eq.f32.partialorder %v82, 0.0
    %v183 = vand.u32 %v82, 2147483648
    %v184 = vsel %vm182, %v183, %v181
    %v185 = vrsqrt.pop %v84
    %v186 = vmul.f32 %v84, %v185
    %vm187 = vcmp.eq.f32.partialorder %v84, inf
    %v188 = vsel %vm187, %v84, %v186
    %vm189 = vcmp.eq.f32.partialorder %v84, 0.0
    %v190 = vand.u32 %v84, 2147483648
    %v191 = vsel %vm189, %v190, %v188
    %v192 = vrsqrt.pop %v86
    %v193 = vmul.f32 %v86, %v192
    %vm194 = vcmp.eq.f32.partialorder %v86, inf
    %v195 = vsel %vm194, %v86, %v193
    %vm196 = vcmp.eq.f32.partialorder %v86, 0.0
    %v197 = vand.u32 %v86, 2147483648
    %v198 = vsel %vm196, %v197, %v195
    %v199 = vmax.f32 %v93, 1e-08
    %v200 = vmax.f32 %v100, 1e-08
    %v201 = vmax.f32 %v107, 1e-08
    %v202 = vmax.f32 %v114, 1e-08
    %v203 = vmax.f32 %v121, 1e-08
    %v204 = vmax.f32 %v128, 1e-08
    %v205 = vmax.f32 %v135, 1e-08
    %v206 = vmax.f32 %v142, 1e-08
    %v207 = vmax.f32 %v149, 1e-08
    %v208 = vmax.f32 %v156, 1e-08
    %v209 = vmax.f32 %v163, 1e-08
    %v210 = vmax.f32 %v170, 1e-08
    %v211 = vmax.f32 %v177, 1e-08
    %v212 = vmax.f32 %v184, 1e-08
    %v213 = vmax.f32 %v191, 1e-08
    %v214 = vmax.f32 %v198, 1e-08
    %v215 = vrcp.pop %v199
    %v216 = vmul.f32 2.5819888, %v215
    %v217 = vrcp.pop %v200
    %v218 = vmul.f32 2.5819888, %v217
    %v219 = vrcp.pop %v201
    %v220 = vmul.f32 2.5819888, %v219
    %v221 = vrcp.pop %v202
    %v222 = vmul.f32 2.5819888, %v221
    %v223 = vrcp.pop %v203
    %v224 = vmul.f32 2.5819888, %v223
    %v225 = vrcp.pop %v204
    %v226 = vmul.f32 2.5819888, %v225
    %v227 = vrcp.pop %v205
    %v228 = vmul.f32 2.5819888, %v227
    %v229 = vrcp.pop %v206
    %v230 = vmul.f32 2.5819888, %v229
    %v231 = vrcp.pop %v207
    %v232 = vmul.f32 2.5819888, %v231
    %v233 = vrcp.pop %v208
    %v234 = vmul.f32 2.5819888, %v233
    %v235 = vrcp.pop %v209
    %v236 = vmul.f32 2.5819888, %v235
    %v237 = vrcp.pop %v210
    %v238 = vmul.f32 2.5819888, %v237
    %v239 = vrcp.pop %v211
    %v240 = vmul.f32 2.5819888, %v239
    %v241 = vrcp.pop %v212
    %v242 = vmul.f32 2.5819888, %v241
    %v243 = vrcp.pop %v213
    %v244 = vmul.f32 2.5819888, %v243
    %v245 = vrcp.pop %v214
    %v246 = vmul.f32 2.5819888, %v245
    %v247 = vmul.f32 %v23, %v216
    %v248 = vmul.f32 %v24, %v218
    %v249 = vmul.f32 %v25, %v220
    %v250 = vmul.f32 %v26, %v222
    %v251 = vmul.f32 %v27, %v224
    %v252 = vmul.f32 %v28, %v226
    %v253 = vmul.f32 %v29, %v228
    %v254 = vmul.f32 %v30, %v230
    %v255 = vmul.f32 %v31, %v232
    %v256 = vmul.f32 %v32, %v234
    %v257 = vmul.f32 %v33, %v236
    %v258 = vmul.f32 %v34, %v238
    %v259 = vmul.f32 %v35, %v240
    %v260 = vmul.f32 %v36, %v242
    %v261 = vmul.f32 %v37, %v244
    %v262 = vmul.f32 %v38, %v246
    %v263 = vpack.c.bf16 %v248, %v247
    %v264 = vpack.c.bf16 %v250, %v249
    %v265 = vpack.c.bf16 %v252, %v251
    %v266 = vpack.c.bf16 %v254, %v253
    %v267 = vpack.c.bf16 %v256, %v255
    %v268 = vpack.c.bf16 %v258, %v257
    %v269 = vpack.c.bf16 %v260, %v259
    %v270 = vpack.c.bf16 %v262, %v261
    %v279 = vunpack.c.l.b16 %v263
    %v280 = vunpack.c.h.b16 %v263
    %v281 = vunpack.c.l.b16 %v264
    %v282 = vunpack.c.h.b16 %v264
    %v283 = vunpack.c.l.b16 %v265
    %v284 = vunpack.c.h.b16 %v265
    %v285 = vunpack.c.l.b16 %v266
    %v286 = vunpack.c.h.b16 %v266
    %v287 = vunpack.c.l.b16 %v267
    %v288 = vunpack.c.h.b16 %v267
    %v289 = vunpack.c.l.b16 %v268
    %v290 = vunpack.c.h.b16 %v268
    %v291 = vunpack.c.l.b16 %v269
    %v292 = vunpack.c.h.b16 %v269
    %v293 = vunpack.c.l.b16 %v270
    %v294 = vunpack.c.h.b16 %v270
    %v295 = vpack.c.b16 %v279, %v279
    %v296 = vpack.c.b16 %v280, %v280
    %v297 = vpack.c.b16 %v281, %v281
    %v298 = vpack.c.b16 %v282, %v282
    %v299 = vpack.c.b16 %v283, %v283
    %v300 = vpack.c.b16 %v284, %v284
    %v301 = vpack.c.b16 %v285, %v285
    %v302 = vpack.c.b16 %v286, %v286
    %v303 = vpack.c.b16 %v287, %v287
    %v304 = vpack.c.b16 %v288, %v288
    %v305 = vpack.c.b16 %v289, %v289
    %v306 = vpack.c.b16 %v290, %v290
    %v307 = vpack.c.b16 %v291, %v291
    %v308 = vpack.c.b16 %v292, %v292
    %v309 = vpack.c.b16 %v293, %v293
    %v310 = vpack.c.b16 %v294, %v294
    %327 = vst [vmem:[#allocation5] sm:$0xf] %v295
    %328 = vst [vmem:[#allocation5 + $0x4] sm:$0xf] %v296
    %329 = vst [vmem:[#allocation5 + $0x8] sm:$0xf] %v297
    %330 = vst [vmem:[#allocation5 + $0xc] sm:$0xf] %v298
    %331 = vst [vmem:[#allocation5 + $0x10] sm:$0xf] %v299
    %332 = vst [vmem:[#allocation5 + $0x14] sm:$0xf] %v300
    %333 = vst [vmem:[#allocation5 + $0x18] sm:$0xf] %v301
    %334 = vst [vmem:[#allocation5 + $0x1c] sm:$0xf] %v302
    %335 = vst [vmem:[#allocation5 + $0x20] sm:$0xf] %v303
    %336 = vst [vmem:[#allocation5 + $0x24] sm:$0xf] %v304
    %337 = vst [vmem:[#allocation5 + $0x28] sm:$0xf] %v305
    %338 = vst [vmem:[#allocation5 + $0x2c] sm:$0xf] %v306
    %339 = vst [vmem:[#allocation5 + $0x30] sm:$0xf] %v307
    %340 = vst [vmem:[#allocation5 + $0x34] sm:$0xf] %v308
    %341 = vst [vmem:[#allocation5 + $0x38] sm:$0xf] %v309
    %342 = vst [vmem:[#allocation5 + $0x3c] sm:$0xf] %v310
    // Predicated region
    $region10: #{tpu_custom_call.1} parent=1 // pred_check
      _
    $region11: #{tpu_custom_call.1} parent=1 // pred_check_branch
      %344 = sbr.rel (0) target = $region13
    $region12: #{tpu_custom_call.1} parent=1 // pred_region
      %s346 = ssub.s32 1024, 1024
      %347 = vsyncadd [#allocation4], %s346
      %s348 = sshll.u32 [#allocation5], 4
      %s349 = int_to_ptr.vmem [resolvable:$true] %s348
      %354 = dma.vmem_to_hbm [thread:$0]  %s349, 1024, %s1, [#allocation4], 64, 64, 4
    $region13: #{tpu_custom_call.1} parent=1 // pred_fallthru
      _
    // Predicated region
    $region14: #{tpu_custom_call.1} parent=1 // pred_check
      _
    $region15: #{tpu_custom_call.1} parent=1 // pred_check_branch
      %356 = sbr.rel (0) target = $region17
    $region16: #{tpu_custom_call.1} parent=1 // pred_region
      %357 = dma.done [#allocation4], 1024
    $region17: #{tpu_custom_call.1} parent=1 // pred_fallthru
      _
    %358 = vsyncpa [#allocation3], 1
    %359 = vsyncpa [#allocation4], 1

</llo_original>
